<compile_context>
chip_gen: v7x
topology: tpu7x:2x2x1
jax: 0.10.0
libtpu: 0.0.40
codegen_flags: <defaults>
</compile_context>

<pallas_src>
import functools

import jax
import jax.numpy as jnp
from jax import lax
from jax.experimental import pallas as pl
from jax.experimental.pallas import tpu as pltpu


# ----------------------------------------------------------------------------
# Kernel 1: streaming GroupNorm statistics -> per-channel scale / shift
# (affine folded).  One-pass f32 sum / sum-of-squares, tiled over rows.
# ----------------------------------------------------------------------------
def group_stats_kernel(x_ref, gmap_ref, gamma_ref, beta_ref,
                       scale_ref, shift_ref, sum_sc, sq_sc, *, inv_cnt, eps):
    r = pl.program_id(1)

    @pl.when(r == 0)
    def _():
        sum_sc[...] = jnp.zeros_like(sum_sc)
        sq_sc[...] = jnp.zeros_like(sq_sc)

    x = x_ref[0]                                          # (TRS, Cp) f32
    sum_sc[...] += jnp.sum(x, axis=0, keepdims=True)      # (1, Cp)
    sq_sc[...] += jnp.sum(x * x, axis=0, keepdims=True)   # (1, Cp)

    @pl.when(r == pl.num_programs(1) - 1)
    def _():
        gmap = gmap_ref[...]                              # (Cp, G) one-hot
        ct = (((1,), (1,)), ((), ()))                     # contract last dims
        gmean = jnp.dot(sum_sc[...], gmap,
                        preferred_element_type=jnp.float32) * jnp.float32(inv_cnt)
        gsq = jnp.dot(sq_sc[...], gmap,
                      preferred_element_type=jnp.float32) * jnp.float32(inv_cnt)
        # one-pass variance; f32 accumulation, clamp against cancellation
        gvar = jnp.maximum(gsq - gmean * gmean, 0.0)
        mean_c = lax.dot_general(gmean, gmap, ct,
                                 preferred_element_type=jnp.float32)   # (1, Cp)
        var_c = lax.dot_general(gvar, gmap, ct,
                                preferred_element_type=jnp.float32)    # (1, Cp)
        inv = lax.rsqrt(var_c + jnp.float32(eps))
        scale = gamma_ref[...] * inv
        scale_ref[0] = scale
        shift_ref[0] = beta_ref[...] - mean_c * scale


# ----------------------------------------------------------------------------
# Kernel 2: normalize + fused QKV projection (single bf16 MXU matmul, N = 3Cp).
# ----------------------------------------------------------------------------
def qkv_kernel(x_ref, scale_ref, shift_ref, w_ref, b_ref, qkv_ref):
    xn = x_ref[0] * scale_ref[0] + shift_ref[0]           # (TR, Cp) f32
    qkv = jnp.dot(xn.astype(jnp.bfloat16), w_ref[...],
                  preferred_element_type=jnp.float32) + b_ref[...]
    qkv_ref[0] = qkv.astype(jnp.bfloat16)                 # (TR, 3Cp)


# ----------------------------------------------------------------------------
# Kernel 3: flash attention (online softmax) + proj_out + residual.
# Query tile TQ and key tile TK are independent.
# ----------------------------------------------------------------------------
def flash_attn_kernel(x_ref, q_ref, k_ref, v_ref, wp_ref, bp_ref, o_ref,
                      m_sc, l_sc, acc_sc):
    ki = pl.program_id(2)

    @pl.when(ki == 0)
    def _():
        m_sc[...] = jnp.full_like(m_sc, -jnp.inf)
        l_sc[...] = jnp.zeros_like(l_sc)
        acc_sc[...] = jnp.zeros_like(acc_sc)

    ct = (((1,), (1,)), ((), ()))
    # q is pre-scaled by C^-0.5 (folded into the weights in the wrapper).
    s = lax.dot_general(q_ref[0], k_ref[0], ct,
                        preferred_element_type=jnp.float32)          # (TQ, TK)

    m_prev = m_sc[...]
    m_new = jnp.maximum(m_prev, jnp.max(s, axis=-1, keepdims=True))
    alpha = jnp.exp(m_prev - m_new)
    p = jnp.exp(s - m_new)
    l_sc[...] = alpha * l_sc[...] + jnp.sum(p, axis=-1, keepdims=True)
    acc_sc[...] = alpha * acc_sc[...] + jnp.dot(
        p.astype(jnp.bfloat16), v_ref[0], preferred_element_type=jnp.float32)
    m_sc[...] = m_new

    @pl.when(ki == pl.num_programs(2) - 1)
    def _():
        h = acc_sc[...] * pl.reciprocal(l_sc[...], approx=True)
        out = jnp.dot(h.astype(jnp.bfloat16), wp_ref[...],
                      preferred_element_type=jnp.float32) + bp_ref[...]
        o_ref[0] = x_ref[0] + out


# ----------------------------------------------------------------------------
# Wrapper helpers
# ----------------------------------------------------------------------------
def _vmem_budget_bytes():
    """Per-call scoped-VMEM limit with headroom for compiler scratch.
    ~48 MiB on v7x (64 MiB physical), ~96 MiB on v5e/v6e (128 MiB)."""
    phys = 64 << 20
    try:
        info = pltpu.get_tpu_info()
        phys = int(getattr(info, "vmem_capacity_bytes", phys))
    except Exception:
        pass
    return max(min(phys - (16 << 20), 96 << 20), 32 << 20)


def _divisors_desc(n, hi=None):
    """Tile candidates for a second-minor axis of extent n: divisors of n that
    are multiples of 8, plus n itself (full-extent blocks are always legal)."""
    hi = n if hi is None else min(hi, n)
    ds = {t for t in range(8, hi + 1, 8) if n % t == 0}
    if n <= hi:
        ds.add(n)
    if not ds:
        ds.add(n)
    return sorted(ds, reverse=True)


def attn_block(x_nchw, params, *, num_groups=32, eps=1e-6):
    B, C, H, W = x_nchw.shape
    HW = H * W
    G = num_groups
    assert C % G == 0
    f32 = jnp.float32

    Cp = max(128, -(-C // 128) * 128)          # lane-dense channel dim
    pad_c = Cp - C

    # NCHW -> (B, HW, Cp) tokens, zero-padded channels (pad skipped if C%128==0).
    x_tok = jnp.transpose(x_nchw, (0, 2, 3, 1)).reshape(B, HW, C).astype(f32)
    if pad_c:
        x_tok = jnp.pad(x_tok, ((0, 0), (0, 0), (0, pad_c)))

    # channel -> group one-hot indicator; zero rows for padded channels.
    group_id = jnp.arange(C) // (C // G)
    gmap = jax.nn.one_hot(group_id, G, dtype=f32)
    if pad_c:
        gmap = jnp.pad(gmap, ((0, pad_c), (0, 0)))          # (Cp, G)

    def pad_vec(v):
        v = v.reshape(1, C).astype(f32)
        return jnp.pad(v, ((0, 0), (0, pad_c))) if pad_c else v

    def pad_mat(w):                    # Conv2d 1x1 (Cout,Cin,1,1) -> (Cin_p,Cout_p)
        w = w.reshape(C, C).T.astype(f32)
        return jnp.pad(w, ((0, pad_c), (0, pad_c))) if pad_c else w

    gamma, beta = pad_vec(params["gamma"]), pad_vec(params["beta"])

    scale_q = f32(int(C) ** (-0.5))    # softmax scale folded into the q path
    w_qkv = jnp.concatenate(
        [pad_mat(params["wq"]) * scale_q, pad_mat(params["wk"]),
         pad_mat(params["wv"])], axis=1).astype(jnp.bfloat16)       # (Cp, 3Cp)
    b_qkv = jnp.concatenate(
        [pad_vec(params["bq"]) * scale_q, pad_vec(params["bk"]),
         pad_vec(params["bv"])], axis=1)                            # (1, 3Cp)
    w_p = pad_mat(params["wp"]).astype(jnp.bfloat16)                # (Cp, Cp)
    b_p = pad_vec(params["bp"])                                     # (1, Cp)

    inv_cnt = 1.0 / float((C // G) * HW)

    # ---- VMEM-aware tile selection -------------------------------------------
    budget = _vmem_budget_bytes()
    fit = int(0.7 * budget)            # leave room inside the scoped limit

    # Kernel 1: x tile double-buffered + indicator + small scratch.
    TRS = next((t for t in _divisors_desc(HW, 2048)
                if 2 * t * Cp * 4 + (Cp * G + 16 * Cp) * 4 <= fit), HW)

    # Kernel 2: x tile, fused weight, bf16 output tile, f32 matmul result.
    def _qkv_fp(t):
        return (2 * t * Cp * 4 + Cp * 3 * Cp * 2 + 2 * t * 3 * Cp * 2
                + t * 3 * Cp * 4 + 8 * Cp * 4)
    TR = next((t for t in _divisors_desc(HW, 1024) if _qkv_fp(t) <= fit), HW)

    # Kernel 3: prefer a large query tile (cuts K/V re-streaming ~1/TQ) and the
    # largest key tile that fits — TK == HW keeps K/V resident per batch.
    def _attn_fp(tq, tk):
        return (2 * tq * Cp * 4            # x residual tile (f32, dbl-buffered)
                + 2 * tq * Cp * 2          # q tile (bf16)
                + 2 * 2 * tk * Cp * 2      # k + v tiles (bf16)
                + 2 * tq * Cp * 4          # out tile (f32)
                + Cp * Cp * 2 + Cp * 4     # wp, bp
                + tq * Cp * 4 + 2 * tq * 4 # acc / m / l scratch
                + 4 * tq * tk * 4)         # s / p temporaries (margin)
    TQ = TK = None
    for tq in _divisors_desc(HW, 512):
        for tk in _divisors_desc(HW):
            if _attn_fp(tq, tk) <= fit:
                TQ, TK = tq, tk
                break
        if TQ is not None:
            break
    if TQ is None:
        TQ = TK = _divisors_desc(HW, 128)[0]

    # ---- kernel 1: streaming GroupNorm stats ---------------------------------
    scale_c, shift_c = pl.pallas_call(
        functools.partial(group_stats_kernel, inv_cnt=inv_cnt, eps=eps),
        out_shape=(jax.ShapeDtypeStruct((B, 1, Cp), f32),
                   jax.ShapeDtypeStruct((B, 1, Cp), f32)),
        grid_spec=pltpu.PrefetchScalarGridSpec(
            num_scalar_prefetch=0, grid=(B, HW // TRS),
            in_specs=[
                pl.BlockSpec((1, TRS, Cp), lambda b, r: (b, r, 0)),
                pl.BlockSpec((Cp, G), lambda b, r: (0, 0)),
                pl.BlockSpec((1, Cp), lambda b, r: (0, 0)),
                pl.BlockSpec((1, Cp), lambda b, r: (0, 0)),
            ],
            out_specs=[pl.BlockSpec((1, 1, Cp), lambda b, r: (b, 0, 0)),
                       pl.BlockSpec((1, 1, Cp), lambda b, r: (b, 0, 0))],
            scratch_shapes=[pltpu.VMEM((1, Cp), f32),    # running sum
                            pltpu.VMEM((1, Cp), f32)],   # running sum of squares
        ),
        compiler_params=pltpu.CompilerParams(
            dimension_semantics=("parallel", "arbitrary"),
            vmem_limit_bytes=budget),
    )(x_tok, gmap, gamma, beta)

    # ---- kernel 2: normalize + fused QKV (bf16) ------------------------------
    qkv = pl.pallas_call(
        qkv_kernel,
        out_shape=jax.ShapeDtypeStruct((B, HW, 3 * Cp), jnp.bfloat16),
        grid_spec=pltpu.PrefetchScalarGridSpec(
            num_scalar_prefetch=0, grid=(B, HW // TR),
            in_specs=[
                pl.BlockSpec((1, TR, Cp), lambda b, r: (b, r, 0)),
                pl.BlockSpec((1, 1, Cp), lambda b, r: (b, 0, 0)),
                pl.BlockSpec((1, 1, Cp), lambda b, r: (b, 0, 0)),
                pl.BlockSpec((Cp, 3 * Cp), lambda b, r: (0, 0)),
                pl.BlockSpec((1, 3 * Cp), lambda b, r: (0, 0)),
            ],
            out_specs=pl.BlockSpec((1, TR, 3 * Cp), lambda b, r: (b, r, 0)),
        ),
        compiler_params=pltpu.CompilerParams(
            dimension_semantics=("parallel", "parallel"),
            vmem_limit_bytes=budget),
    )(x_tok, scale_c, shift_c, w_qkv, b_qkv)

    # ---- kernel 3: flash attention + proj_out + residual ---------------------
    nTQ, nTK = HW // TQ, HW // TK
    # qkv is passed three times; the channel block index (0/1/2) selects q/k/v.
    # K/V blocks are indexed by ki only -> re-DMA'd once per K step (once per
    # batch when TK == HW); x/q blocks indexed by qi stay resident across ki.
    out_tok = pl.pallas_call(
        flash_attn_kernel,
        out_shape=jax.ShapeDtypeStruct((B, HW, Cp), f32),
        grid_spec=pltpu.PrefetchScalarGridSpec(
            num_scalar_prefetch=0, grid=(B, nTQ, nTK),
            in_specs=[
                pl.BlockSpec((1, TQ, Cp), lambda b, qi, ki: (b, qi, 0)),   # x
                pl.BlockSpec((1, TQ, Cp), lambda b, qi, ki: (b, qi, 0)),   # q
                pl.BlockSpec((1, TK, Cp), lambda b, qi, ki: (b, ki, 1)),   # k
                pl.BlockSpec((1, TK, Cp), lambda b, qi, ki: (b, ki, 2)),   # v
                pl.BlockSpec((Cp, Cp), lambda b, qi, ki: (0, 0)),          # wp
                pl.BlockSpec((1, Cp), lambda b, qi, ki: (0, 0)),           # bp
            ],
            out_specs=pl.BlockSpec((1, TQ, Cp), lambda b, qi, ki: (b, qi, 0)),
            scratch_shapes=[pltpu.VMEM((TQ, 1), f32),     # running max
                            pltpu.VMEM((TQ, 1), f32),     # running sum
                            pltpu.VMEM((TQ, Cp), f32)],   # accumulator
        ),
        compiler_params=pltpu.CompilerParams(
            dimension_semantics=("parallel", "parallel", "arbitrary"),
            vmem_limit_bytes=budget),
    )(x_tok, qkv, qkv, qkv, w_p, b_p)

    # strip channel padding, back to NCHW
    out_tok = out_tok[..., :C]
    return jnp.transpose(out_tok.reshape(B, H, W, C), (0, 3, 1, 2))


# ----------------------------------------------------------------------------
# Pure-JAX reference mirroring the PyTorch forward (f32 throughout).
# ----------------------------------------------------------------------------
def attn_block_ref(x_nchw, params, *, num_groups=32, eps=1e-6):
    B, C, H, W = x_nchw.shape
    x = x_nchw.astype(jnp.float32)
    xg = x.reshape(B, num_groups, C // num_groups, H, W)
    mean = jnp.mean(xg, axis=(2, 3, 4), keepdims=True)
    var = jnp.var(xg, axis=(2, 3, 4), keepdims=True)
    xn = ((xg - mean) / jnp.sqrt(var + eps)).reshape(B, C, H, W)
    xn = xn * params["gamma"].reshape(1, C, 1, 1) + params["beta"].reshape(1, C, 1, 1)

    def conv1x1(h, w, b):
        return jnp.einsum("bchw,oc->bohw", h, w.reshape(C, C)) + b.reshape(1, C, 1, 1)

    q = conv1x1(xn, params["wq"], params["bq"])
    k = conv1x1(xn, params["wk"], params["bk"])
    v = conv1x1(xn, params["wv"], params["bv"])
    q = q.reshape(B, C, H * W).transpose(0, 2, 1)
    k = k.reshape(B, C, H * W)
    w_ = jnp.einsum("bic,bcj->bij", q, k) * (int(C) ** (-0.5))
    w_ = jax.nn.softmax(w_, axis=2)
    v = v.reshape(B, C, H * W)
    h_ = jnp.einsum("bcj,bij->bci", v, w_).reshape(B, C, H, W)
    h_ = conv1x1(h_, params["wp"], params["bp"])
    return x + h_


if __name__ == "__main__":
    B, C, H, W = 2, 32, 8, 8   # num_groups=32 requires C % 32 == 0
    key = jax.random.PRNGKey(0)
    keys = jax.random.split(key, 12)

    x = jax.random.normal(keys[0], (B, C, H, W), dtype=jnp.float32)

    def winit(k):
        return 0.1 * jax.random.normal(k, (C, C, 1, 1), dtype=jnp.float32)

    params = {
        "gamma": 1.0 + 0.05 * jax.random.normal(keys[1], (C,), dtype=jnp.float32),
        "beta": 0.05 * jax.random.normal(keys[2], (C,), dtype=jnp.float32),
        "wq": winit(keys[3]), "bq": 0.01 * jax.random.normal(keys[4], (C,), dtype=jnp.float32),
        "wk": winit(keys[5]), "bk": 0.01 * jax.random.normal(keys[6], (C,), dtype=jnp.float32),
        "wv": winit(keys[7]), "bv": 0.01 * jax.random.normal(keys[8], (C,), dtype=jnp.float32),
        "wp": winit(keys[9]), "bp": 0.01 * jax.random.normal(keys[10], (C,), dtype=jnp.float32),
    }

    out = attn_block(x, params)
    out = jax.block_until_ready(out)

    ref = attn_block_ref(x, params)
    assert out.shape == (B, C, H, W)
    # bf16 MXU inputs + approx reciprocal -> tolerance looser than pure f32.
    err = float(jnp.max(jnp.abs(out - ref)))
    assert err < 5e-2, f"max abs err {err}"

    print("KERNEL_OK")
</pallas_src>

<mosaic_0001>
module attributes {stable_mosaic.version = 11 : i64} {
  func.func @group_stats_kernel(%arg0: i32, %arg1: i32, %arg2: memref<1x64x128xf32, #tpu.memory_space<vmem>>, %arg3: memref<128x32xf32, #tpu.memory_space<vmem>>, %arg4: memref<1x128xf32, #tpu.memory_space<vmem>>, %arg5: memref<1x128xf32, #tpu.memory_space<vmem>>, %arg6: memref<1x1x128xf32, #tpu.memory_space<vmem>>, %arg7: memref<1x1x128xf32, #tpu.memory_space<vmem>>, %arg8: memref<1x128xf32, #tpu.memory_space<vmem>>, %arg9: memref<1x128xf32, #tpu.memory_space<vmem>>) attributes {dimension_semantics = [#tpu.dimension_semantics<parallel>, #tpu.dimension_semantics<arbitrary>], iteration_bounds = array<i64: 2, 1>, scalar_prefetch = 0 : i64, scratch_operands = 2 : i64, tpu.core_type = #tpu.core_type<tc>, window_params = [{transform_indices = @transform_0, window_bounds = array<i64: 1, 64, 128>}, {pipeline_mode = #tpu.pipeline_mode<synchronous>, transform_indices = @transform_1, window_bounds = array<i64: 128, 32>}, {pipeline_mode = #tpu.pipeline_mode<synchronous>, transform_indices = @transform_2, window_bounds = array<i64: 1, 128>}, {pipeline_mode = #tpu.pipeline_mode<synchronous>, transform_indices = @transform_3, window_bounds = array<i64: 1, 128>}, {transform_indices = @transform_4, window_bounds = array<i64: 1, 1, 128>}, {transform_indices = @transform_5, window_bounds = array<i64: 1, 1, 128>}]} {
    %c0_i32 = arith.constant 0 : i32
    %0 = arith.cmpi eq, %arg1, %c0_i32 : i32
    %1 = arith.extui %0 : i1 to i32
    %c0_i32_0 = arith.constant 0 : i32
    %2 = arith.cmpi ne, %1, %c0_i32_0 : i32
    scf.if %2 {
      %cst_14 = arith.constant 0.000000e+00 : f32
      %19 = vector.broadcast %cst_14 : f32 to vector<1x128xf32>
      %c0_15 = arith.constant 0 : index
      %c0_16 = arith.constant 0 : index
      %20 = vector.load %arg8[%c0_15, %c0_16] : memref<1x128xf32, #tpu.memory_space<vmem>>, vector<1x128xf32>
      tpu.vector_store %arg8[%c0_15, %c0_16], %19 {strides = array<i32>} : memref<1x128xf32, #tpu.memory_space<vmem>>, vector<1x128xf32>,
      %cst_17 = arith.constant 0.000000e+00 : f32
      %21 = vector.broadcast %cst_17 : f32 to vector<1x128xf32>
      %c0_18 = arith.constant 0 : index
      %c0_19 = arith.constant 0 : index
      %22 = vector.load %arg9[%c0_18, %c0_19] : memref<1x128xf32, #tpu.memory_space<vmem>>, vector<1x128xf32>
      tpu.vector_store %arg9[%c0_18, %c0_19], %21 {strides = array<i32>} : memref<1x128xf32, #tpu.memory_space<vmem>>, vector<1x128xf32>,
    } else {
    }
    %c0 = arith.constant 0 : index
    %c0_1 = arith.constant 0 : index
    %c0_2 = arith.constant 0 : index
    %3 = vector.load %arg2[%c0, %c0_1, %c0_2] : memref<1x64x128xf32, #tpu.memory_space<vmem>>, vector<1x64x128xf32>
    %4 = vector.shape_cast %3 : vector<1x64x128xf32> to vector<64x128xf32>
    %c0_3 = arith.constant 0 : index
    %c0_4 = arith.constant 0 : index
    %5 = vector.load %arg8[%c0_3, %c0_4] : memref<1x128xf32, #tpu.memory_space<vmem>>, vector<1x128xf32>
    %cst = arith.constant dense<0.000000e+00> : vector<128xf32>
    %6 = vector.multi_reduction <add>, %4, %cst [0] : vector<64x128xf32> to vector<128xf32>
    %7 = vector.shape_cast %6 : vector<128xf32> to vector<1x128xf32>
    %8 = arith.addf %5, %7 : vector<1x128xf32>
    %c0_5 = arith.constant 0 : index
    %c0_6 = arith.constant 0 : index
    %9 = vector.load %arg8[%c0_5, %c0_6] : memref<1x128xf32, #tpu.memory_space<vmem>>, vector<1x128xf32>
    tpu.vector_store %arg8[%c0_5, %c0_6], %8 {strides = array<i32>} : memref<1x128xf32, #tpu.memory_space<vmem>>, vector<1x128xf32>,
    %c0_7 = arith.constant 0 : index
    %c0_8 = arith.constant 0 : index
    %10 = vector.load %arg9[%c0_7, %c0_8] : memref<1x128xf32, #tpu.memory_space<vmem>>, vector<1x128xf32>
    %11 = arith.mulf %4, %4 : vector<64x128xf32>
    %cst_9 = arith.constant dense<0.000000e+00> : vector<128xf32>
    %12 = vector.multi_reduction <add>, %11, %cst_9 [0] : vector<64x128xf32> to vector<128xf32>
    %13 = vector.shape_cast %12 : vector<128xf32> to vector<1x128xf32>
    %14 = arith.addf %10, %13 : vector<1x128xf32>
    %c0_10 = arith.constant 0 : index
    %c0_11 = arith.constant 0 : index
    %15 = vector.load %arg9[%c0_10, %c0_11] : memref<1x128xf32, #tpu.memory_space<vmem>>, vector<1x128xf32>
    tpu.vector_store %arg9[%c0_10, %c0_11], %14 {strides = array<i32>} : memref<1x128xf32, #tpu.memory_space<vmem>>, vector<1x128xf32>,
    %c0_i32_12 = arith.constant 0 : i32
    %16 = arith.cmpi eq, %arg1, %c0_i32_12 : i32
    %17 = arith.extui %16 : i1 to i32
    %c0_i32_13 = arith.constant 0 : i32
    %18 = arith.cmpi ne, %17, %c0_i32_13 : i32
    scf.if %18 {
      %c0_14 = arith.constant 0 : index
      %c0_15 = arith.constant 0 : index
      %19 = vector.load %arg3[%c0_14, %c0_15] : memref<128x32xf32, #tpu.memory_space<vmem>>, vector<128x32xf32>
      %c0_16 = arith.constant 0 : index
      %c0_17 = arith.constant 0 : index
      %20 = vector.load %arg8[%c0_16, %c0_17] : memref<1x128xf32, #tpu.memory_space<vmem>>, vector<1x128xf32>
      %cst_18 = arith.constant dense<0.000000e+00> : vector<1x32xf32>
      %21 = tpu.matmul %20, %19, %cst_18 {dimension_numbers = #tpu.dot_dimension_numbers<[1], [0], [0], [1], [0, 0, 1, 1], [], []>} : vector<1x128xf32>, vector<128x32xf32>, vector<1x32xf32> -> vector<1x32xf32>
      %cst_19 = arith.constant 1.562500e-02 : f32
      %22 = vector.broadcast %cst_19 : f32 to vector<1x32xf32>
      %23 = arith.mulf %21, %22 : vector<1x32xf32>
      %c0_20 = arith.constant 0 : index
      %c0_21 = arith.constant 0 : index
      %24 = vector.load %arg9[%c0_20, %c0_21] : memref<1x128xf32, #tpu.memory_space<vmem>>, vector<1x128xf32>
      %cst_22 = arith.constant dense<0.000000e+00> : vector<1x32xf32>
      %25 = tpu.matmul %24, %19, %cst_22 {dimension_numbers = #tpu.dot_dimension_numbers<[1], [0], [0], [1], [0, 0, 1, 1], [], []>} : vector<1x128xf32>, vector<128x32xf32>, vector<1x32xf32> -> vector<1x32xf32>
      %cst_23 = arith.constant 1.562500e-02 : f32
      %26 = vector.broadcast %cst_23 : f32 to vector<1x32xf32>
      %27 = arith.mulf %25, %26 : vector<1x32xf32>
      %28 = arith.mulf %23, %23 : vector<1x32xf32>
      %29 = arith.subf %27, %28 : vector<1x32xf32>
      %cst_24 = arith.constant 0.000000e+00 : f32
      %30 = vector.broadcast %cst_24 : f32 to vector<1x32xf32>
      %31 = arith.maximumf %29, %30 : vector<1x32xf32>
      %cst_25 = arith.constant dense<0.000000e+00> : vector<1x128xf32>
      %32 = tpu.matmul %23, %19, %cst_25 {dimension_numbers = #tpu.dot_dimension_numbers<[1], [1], [0], [0], [0, 0, 1, 0], [], []>} : vector<1x32xf32>, vector<128x32xf32>, vector<1x128xf32> -> vector<1x128xf32>
      %cst_26 = arith.constant dense<0.000000e+00> : vector<1x128xf32>
      %33 = tpu.matmul %31, %19, %cst_26 {dimension_numbers = #tpu.dot_dimension_numbers<[1], [1], [0], [0], [0, 0, 1, 0], [], []>} : vector<1x32xf32>, vector<128x32xf32>, vector<1x128xf32> -> vector<1x128xf32>
      %cst_27 = arith.constant 9.99999997E-7 : f32
      %34 = vector.broadcast %cst_27 : f32 to vector<1x128xf32>
      %35 = arith.addf %33, %34 : vector<1x128xf32>
      %36 = math.rsqrt %35 : vector<1x128xf32>
      %c0_28 = arith.constant 0 : index
      %c0_29 = arith.constant 0 : index
      %37 = vector.load %arg4[%c0_28, %c0_29] : memref<1x128xf32, #tpu.memory_space<vmem>>, vector<1x128xf32>
      %38 = arith.mulf %37, %36 : vector<1x128xf32>
      %c0_30 = arith.constant 0 : index
      %c0_31 = arith.constant 0 : index
      %c0_32 = arith.constant 0 : index
      %39 = vector.load %arg6[%c0_30, %c0_31, %c0_32] : memref<1x1x128xf32, #tpu.memory_space<vmem>>, vector<1x1x128xf32>
      %40 = vector.shape_cast %39 : vector<1x1x128xf32> to vector<1x128xf32>
      %41 = vector.shape_cast %38 : vector<1x128xf32> to vector<1x1x128xf32>
      tpu.vector_store %arg6[%c0_30, %c0_31, %c0_32], %41 {strides = array<i32>} : memref<1x1x128xf32, #tpu.memory_space<vmem>>, vector<1x1x128xf32>,
      %c0_33 = arith.constant 0 : index
      %c0_34 = arith.constant 0 : index
      %42 = vector.load %arg5[%c0_33, %c0_34] : memref<1x128xf32, #tpu.memory_space<vmem>>, vector<1x128xf32>
      %43 = arith.mulf %32, %38 : vector<1x128xf32>
      %44 = arith.subf %42, %43 : vector<1x128xf32>
      %c0_35 = arith.constant 0 : index
      %c0_36 = arith.constant 0 : index
      %c0_37 = arith.constant 0 : index
      %45 = vector.load %arg7[%c0_35, %c0_36, %c0_37] : memref<1x1x128xf32, #tpu.memory_space<vmem>>, vector<1x1x128xf32>
      %46 = vector.shape_cast %45 : vector<1x1x128xf32> to vector<1x128xf32>
      %47 = vector.shape_cast %44 : vector<1x128xf32> to vector<1x1x128xf32>
      tpu.vector_store %arg7[%c0_35, %c0_36, %c0_37], %47 {strides = array<i32>} : memref<1x1x128xf32, #tpu.memory_space<vmem>>, vector<1x1x128xf32>,
    } else {
    }
    return
  }
  func.func @transform_0(%arg0: i32, %arg1: i32) -> (i32, i32, i32) {
    %c0_i32 = arith.constant 0 : i32
    %c0_i32_0 = arith.constant 0 : i32
    return %arg0, %arg1, %c0_i32 : i32, i32, i32
  }
  func.func @transform_1(%arg0: i32, %arg1: i32) -> (i32, i32) {
    %c0_i32 = arith.constant 0 : i32
    %c0_i32_0 = arith.constant 0 : i32
    %c0_i32_1 = arith.constant 0 : i32
    return %c0_i32, %c0_i32_0 : i32, i32
  }
  func.func @transform_2(%arg0: i32, %arg1: i32) -> (i32, i32) {
    %c0_i32 = arith.constant 0 : i32
    %c0_i32_0 = arith.constant 0 : i32
    %c0_i32_1 = arith.constant 0 : i32
    return %c0_i32, %c0_i32_0 : i32, i32
  }
  func.func @transform_3(%arg0: i32, %arg1: i32) -> (i32, i32) {
    %c0_i32 = arith.constant 0 : i32
    %c0_i32_0 = arith.constant 0 : i32
    %c0_i32_1 = arith.constant 0 : i32
    return %c0_i32, %c0_i32_0 : i32, i32
  }
  func.func @transform_4(%arg0: i32, %arg1: i32) -> (i32, i32, i32) {
    %c0_i32 = arith.constant 0 : i32
    %c0_i32_0 = arith.constant 0 : i32
    %c0_i32_1 = arith.constant 0 : i32
    return %arg0, %c0_i32, %c0_i32_0 : i32, i32, i32
  }
  func.func @transform_5(%arg0: i32, %arg1: i32) -> (i32, i32, i32) {
    %c0_i32 = arith.constant 0 : i32
    %c0_i32_0 = arith.constant 0 : i32
    %c0_i32_1 = arith.constant 0 : i32
    return %arg0, %c0_i32, %c0_i32_0 : i32, i32, i32
  }
}

</mosaic_0001>

<llo_original>
// kernel: tpu_custom_call.1
$region0: #{tpu_custom_call.1}
  #allocation0 [shape = 'u32[]', space=smem, size = 0x4, offset = 0x4, fixed_abs, tag = 'smem constant byte address 0x4 - core index']
  #allocation1 [shape = 'u32[144,128]{1,0:T(1,128)}', space=vmem, size = 0x12000, scoped, tag = 'internal scratch']
  #allocation2 [shape = 'f32[1,128]{1,0:T(1,128)}', space=vmem, size = 0x200, scoped, tag = 'scratch operand']
  #allocation3 [shape = 'f32[1,128]{1,0:T(1,128)}', space=vmem, size = 0x200, scoped, tag = 'scratch operand']
  %s0 = inlined_call_operand.vmem [shape: f32[2,64,128], index: 0, kind: input, shape index: {}]
  %s1 = inlined_call_operand.vmem [shape: f32[128,32], index: 1, kind: input, shape index: {}]
  %s2 = inlined_call_operand.vmem [shape: f32[1,128], index: 2, kind: input, shape index: {}]
  %s3 = inlined_call_operand.vmem [shape: f32[1,128], index: 3, kind: input, shape index: {}]
  %s4 = inlined_call_operand.hbm [shape: f32[2,1,128], index: 4, kind: output, shape index: {0}]
  %s5 = inlined_call_operand.hbm [shape: f32[2,1,128], index: 5, kind: output, shape index: {1}]
  %6 = xla_tuple %s4, %s5
  %s7 = sld [smem:[#allocation0]]
  $region65: #{tpu_custom_call.1} parent=0
    _
  %s9 = ssub.s32 1, %s7
  %s10 = scalar_select 0, %s9, %s7
  $region1: #{tpu_custom_call.1} parent=0
    #allocation4 [shape = 'u8[1024]{0}', space=vmem, size = 0x400, scoped, tag = 'output window, operand 0']
    #allocation5 [shape = 's32[2]{0}', space=sflag, size = 0x8, scoped, tag = 'scoped memory for tpu_custom_call.1']
    #allocation6 [shape = 'u8[1024]{0}', space=vmem, size = 0x400, scoped, tag = 'output window, operand 1']
    #allocation7 [shape = 's32[2]{0}', space=sflag, size = 0x8, scoped, tag = 'scoped memory for tpu_custom_call.1']
    %11 = vsyncpa [#allocation5], 0
    %s12 = scalar_lea.sflag [#allocation5], 1
    %13 = vsyncpa %s12, 0
    %14 = vsyncpa [#allocation7], 0
    %s15 = scalar_lea.sflag [#allocation7], 1
    %16 = vsyncpa %s15, 0
    loop: start=0, step=1, limit=4
    $region2: #{tpu_custom_call.1} parent=1 // loop_pre_header
      _
    $region3: #{tpu_custom_call.1} parent=1 // loop_header
      %s18 = sphi 0, %s22
      %p19 = scmp.ge.s32.totalorder %s18, 4
      %s25 = sphi 0, %s37
      %s26 = sphi 0, %s33
      %s27 = sphi 0, %s25
      %s28 = sphi 0, %s26
      %s29 = sphi 0, %s27
      %s30 = sphi 0, %s28
      %s42 = sphi 0, %s44
      %s45 = sphi 0, %s42
      %s46 = sphi 0, %s45
      %s62 = sphi 0, %s46
      %s66 = sphi 0, %s66
      %s68 = sphi 0, %s66
      %s69 = sphi 0, %s68
      %s83 = sphi 0, %s69
      %s87 = sphi 0, %s87
      %s89 = sphi 0, %s87
      %s90 = sphi 0, %s89
      %s104 = sphi 0, %s90
      %s108 = sphi 0, %s108
      %s110 = sphi 0, %s108
      %s111 = sphi 0, %s110
      %s125 = sphi 0, %s111
      %s131 = sphi 0, %s133
      %s134 = sphi 0, %s131
      %s135 = sphi 0, %s134
      %s151 = sphi 0, %s135
      %s157 = sphi 0, %s159
      %s160 = sphi 0, %s157
      %s161 = sphi 0, %s160
      %s177 = sphi 0, %s161
    $region4: #{tpu_custom_call.1} parent=1 // loop_header_branch
      %21 = sbr.rel (%p19) target = $region8
    $region5: #{tpu_custom_call.1} parent=1 // loop_body
      %s23 = ssub.s32 %s18, 1
      %s24 = ssub.s32 %s18, 2
      %s31 = sadd.s32 1, %s26
      %p32 = scmp.ge.s32.totalorder %s31, 1
      %s33 = scalar_select %p32, 0, %s31
      %s34 = sadd.s32 1, %s25
      %s35 = scalar_select %p32, %s34, %s25
      %p36 = scmp.ge.s32.totalorder %s35, 2
      %s37 = scalar_select %p36, 0, %s35
      %s38 = ssub.s32 %s25, %s37
      %s39 = ssub.s32 %s26, %s33
      %s40 = sor.u32 %s38, %s39
      %p41 = scmp.eq.s32.totalorder %s40, 0
      %s43 = sadd.s32 %s42, 1
      %s44 = scalar_select %p41, %s42, %s43
      %p47 = pneg %p41
      %p48 = scmp.eq.s32.totalorder %s18, 1
      %p49 = por %p47, %p48
      %p50 = scmp.ne.s32.totalorder %s42, %s45
      %p51 = scmp.eq.s32.totalorder %s18, 0
      %p52 = por %p50, %p51
      %p53 = scmp.ne.s32.totalorder %s42, %s45
      %p54 = scmp.eq.s32.totalorder %s23, 1
      %p55 = por %p53, %p54
      %p56 = scmp.ne.s32.totalorder %s45, %s46
      %p57 = scmp.eq.s32.totalorder %s23, 0
      %p58 = por %p56, %p57
      %p59 = scmp.ne.s32.totalorder %s45, %s46
      %p60 = scmp.eq.s32.totalorder %s24, 1
      %p61 = por %p59, %p60
      %p63 = scmp.ne.s32.totalorder %s46, %s62
      %p64 = scmp.eq.s32.totalorder %s24, 0
      %p65 = por %p63, %p64
      %s67 = sadd.s32 %s66, 1
      %p70 = scmp.eq.s32.totalorder %s18, 1
      %p71 = scmp.ne.s32.totalorder %s66, %s68
      %p72 = scmp.eq.s32.totalorder %s18, 0
      %p73 = por %p71, %p72
      %p74 = scmp.ne.s32.totalorder %s66, %s68
      %p75 = scmp.eq.s32.totalorder %s23, 1
      %p76 = por %p74, %p75
      %p77 = scmp.ne.s32.totalorder %s68, %s69
      %p78 = scmp.eq.s32.totalorder %s23, 0
      %p79 = por %p77, %p78
      %p80 = scmp.ne.s32.totalorder %s68, %s69
      %p81 = scmp.eq.s32.totalorder %s24, 1
      %p82 = por %p80, %p81
      %p84 = scmp.ne.s32.totalorder %s69, %s83
      %p85 = scmp.eq.s32.totalorder %s24, 0
      %p86 = por %p84, %p85
      %s88 = sadd.s32 %s87, 1
      %p91 = scmp.eq.s32.totalorder %s18, 1
      %p92 = scmp.ne.s32.totalorder %s87, %s89
      %p93 = scmp.eq.s32.totalorder %s18, 0
      %p94 = por %p92, %p93
      %p95 = scmp.ne.s32.totalorder %s87, %s89
      %p96 = scmp.eq.s32.totalorder %s23, 1
      %p97 = por %p95, %p96
      %p98 = scmp.ne.s32.totalorder %s89, %s90
      %p99 = scmp.eq.s32.totalorder %s23, 0
      %p100 = por %p98, %p99
      %p101 = scmp.ne.s32.totalorder %s89, %s90
      %p102 = scmp.eq.s32.totalorder %s24, 1
      %p103 = por %p101, %p102
      %p105 = scmp.ne.s32.totalorder %s90, %s104
      %p106 = scmp.eq.s32.totalorder %s24, 0
      %p107 = por %p105, %p106
      %s109 = sadd.s32 %s108, 1
      %p112 = scmp.eq.s32.totalorder %s18, 1
      %p113 = scmp.ne.s32.totalorder %s108, %s110
      %p114 = scmp.eq.s32.totalorder %s18, 0
      %p115 = por %p113, %p114
      %p116 = scmp.ne.s32.totalorder %s108, %s110
      %p117 = scmp.eq.s32.totalorder %s23, 1
      %p118 = por %p116, %p117
      %p119 = scmp.ne.s32.totalorder %s110, %s111
      %p120 = scmp.eq.s32.totalorder %s23, 0
      %p121 = por %p119, %p120
      %p122 = scmp.ne.s32.totalorder %s110, %s111
      %p123 = scmp.eq.s32.totalorder %s24, 1
      %p124 = por %p122, %p123
      %p126 = scmp.ne.s32.totalorder %s111, %s125
      %p127 = scmp.eq.s32.totalorder %s24, 0
      %p128 = por %p126, %p127
      %s129 = ssub.s32 %s25, %s37
      %p130 = scmp.eq.s32.totalorder %s129, 0
      %s132 = sadd.s32 %s131, 1
      %s133 = scalar_select %p130, %s131, %s132
      %p136 = pneg %p130
      %p137 = scmp.eq.s32.totalorder %s18, 1
      %p138 = por %p136, %p137
      %p139 = scmp.ne.s32.totalorder %s131, %s134
      %p140 = scmp.eq.s32.totalorder %s18, 0
      %p141 = por %p139, %p140
      %p142 = scmp.ne.s32.totalorder %s131, %s134
      %p143 = scmp.eq.s32.totalorder %s23, 1
      %p144 = por %p142, %p143
      %p145 = scmp.ne.s32.totalorder %s134, %s135
      %p146 = scmp.eq.s32.totalorder %s23, 0
      %p147 = por %p145, %p146
      %p148 = scmp.ne.s32.totalorder %s134, %s135
      %p149 = scmp.eq.s32.totalorder %s24, 1
      %p150 = por %p148, %p149
      %p152 = scmp.ne.s32.totalorder %s135, %s151
      %p153 = scmp.eq.s32.totalorder %s24, 0
      %p154 = por %p152, %p153
      %s155 = ssub.s32 %s25, %s37
      %p156 = scmp.eq.s32.totalorder %s155, 0
      %s158 = sadd.s32 %s157, 1
      %s159 = scalar_select %p156, %s157, %s158
      %p162 = pneg %p156
      %p163 = scmp.eq.s32.totalorder %s18, 1
      %p164 = por %p162, %p163
      %p165 = scmp.ne.s32.totalorder %s157, %s160
      %p166 = scmp.eq.s32.totalorder %s18, 0
      %p167 = por %p165, %p166
      %p168 = scmp.ne.s32.totalorder %s157, %s160
      %p169 = scmp.eq.s32.totalorder %s23, 1
      %p170 = por %p168, %p169
      %p171 = scmp.ne.s32.totalorder %s160, %s161
      %p172 = scmp.eq.s32.totalorder %s23, 0
      %p173 = por %p171, %p172
      %p174 = scmp.ne.s32.totalorder %s160, %s161
      %p175 = scmp.eq.s32.totalorder %s24, 1
      %p176 = por %p174, %p175
      %p178 = scmp.ne.s32.totalorder %s161, %s177
      %p179 = scmp.eq.s32.totalorder %s24, 0
      %p180 = por %p178, %p179
      %p181 = scmp.le.s32.totalorder 1, %s18
      %p182 = scmp.lt.s32.totalorder %s18, 3
      %p183 = pnand %p181, %p182
      %p184 = pneg %p183
      // Predicated region
      $region9: #{tpu_custom_call.1} parent=5 // pred_check
        _
      $region10: #{tpu_custom_call.1} parent=5 // pred_check_branch
        %186 = sbr.rel (%p183) target = $region12
      $region11: #{tpu_custom_call.1} parent=5 // pred_region
        %s187 = ssub.s32 %s18, 1
        // Predicated region
        $region13: #{tpu_custom_call.1} parent=11 // pred_check
          %p188 = pneg %p79
        $region14: #{tpu_custom_call.1} parent=11 // pred_check_branch
          %190 = sbr.rel (%p188) target = $region16
        $region15: #{tpu_custom_call.1} parent=11 // pred_region
          _
        $region16: #{tpu_custom_call.1} parent=11 // pred_fallthru
          _
        // Predicated region
        $region17: #{tpu_custom_call.1} parent=11 // pred_check
          %p191 = pneg %p100
        $region18: #{tpu_custom_call.1} parent=11 // pred_check_branch
          %193 = sbr.rel (%p191) target = $region20
        $region19: #{tpu_custom_call.1} parent=11 // pred_region
          _
        $region20: #{tpu_custom_call.1} parent=11 // pred_fallthru
          _
        // Predicated region
        $region21: #{tpu_custom_call.1} parent=11 // pred_check
          %p194 = pneg %p121
        $region22: #{tpu_custom_call.1} parent=11 // pred_check_branch
          %196 = sbr.rel (%p194) target = $region24
        $region23: #{tpu_custom_call.1} parent=11 // pred_region
          _
        $region24: #{tpu_custom_call.1} parent=11 // pred_fallthru
          _
      $region12: #{tpu_custom_call.1} parent=5 // pred_fallthru
        _
      %p197 = scmp.lt.s32.totalorder %s18, 2
      // Predicated region
      $region25: #{tpu_custom_call.1} parent=5 // pred_check
        %p198 = pneg %p197
      $region26: #{tpu_custom_call.1} parent=5 // pred_check_branch
        %200 = sbr.rel (%p198) target = $region28
      $region27: #{tpu_custom_call.1} parent=5 // pred_region
        // Predicated region
        $region29: #{tpu_custom_call.1} parent=27 // pred_check
          %p201 = pneg %p52
        $region30: #{tpu_custom_call.1} parent=27 // pred_check_branch
          %203 = sbr.rel (%p201) target = $region32
        $region31: #{tpu_custom_call.1} parent=27 // pred_region
          %s204 = smul.u32 8, %s26
          %p205 = scmp.lt.s32.totalorder %s25, 1
          %s206 = scalar_select %p205, %s25, 1
          %p207 = scmp.lt.s32.totalorder %s204, 7
          %s208 = scalar_select %p207, %s204, 7
          %s209 = smul.addr %s206, 8
          %s210 = sadd.s32 %s208, %s209
          %s211 = smul.addr %s210, 8
          %s212 = scalar_lea.vmem %s0, %s211
          %s213 = smul.u32 8, %s26
        $region32: #{tpu_custom_call.1} parent=27 // pred_fallthru
          _
      $region28: #{tpu_custom_call.1} parent=5 // pred_fallthru
        _
      %p214 = scmp.le.s32.totalorder 1, %s18
      %p215 = scmp.lt.s32.totalorder %s18, 3
      %p216 = pnand %p214, %p215
      %p217 = pneg %p216
      // Predicated region
      $region33: #{tpu_custom_call.1} parent=5 // pred_check
        _
      $region34: #{tpu_custom_call.1} parent=5 // pred_check_branch
        %219 = sbr.rel (%p216) target = $region36
      $region35: #{tpu_custom_call.1} parent=5 // pred_region
        %s220 = ssub.s32 %s18, 1
        %s221 = smul.u32 8, %s28
        %p222 = scmp.lt.s32.totalorder %s27, 1
        %s223 = scalar_select %p222, %s27, 1
        %p224 = scmp.lt.s32.totalorder %s221, 7
        %s225 = scalar_select %p224, %s221, 7
        %s226 = smul.addr %s223, 8
        %s227 = sadd.s32 %s225, %s226
        %s228 = smul.addr %s227, 8
        %s229 = scalar_lea.vmem %s0, %s228
        %p230 = pneg %p58
        %p231 = pneg %p55
        %p232 = pneg %p79
        %p233 = pneg %p76
        %p234 = pneg %p100
        %p235 = pneg %p97
        %p236 = pneg %p121
        %p237 = pneg %p118
        %p238 = pneg %p147
        %p239 = pneg %p144
        %s240 = sand.u32 %s134, 1
        %s241 = scalar_lea.sflag [#allocation5], %s240
        %s242 = sand.u32 %s134, 1
        %s243 = scalar_lea.vmem [#allocation4], %s242
        %p244 = pneg %p173
        %p245 = pneg %p170
        %s246 = sand.u32 %s160, 1
        %s247 = scalar_lea.sflag [#allocation7], %s246
        %s248 = sand.u32 %s160, 1
        %s249 = scalar_lea.vmem [#allocation6], %s248
        %s250 = smul.u32 8, %s28
        %p251 = scmp.lt.s32.totalorder %s27, 1
        %s252 = scalar_select %p251, %s27, 1
        %p253 = scmp.lt.s32.totalorder %s250, 7
        %s254 = scalar_select %p253, %s250, 7
        %s255 = smul.addr %s252, 8
        %s256 = sadd.s32 %s254, %s255
        %s257 = smul.addr %s256, 8
        %s258 = scalar_lea.vmem %s0, %s257
        %s259 = smul.u32 8, %s28
        %p260 = scmp.eq.s32.totalorder %s28, 0
        // Predicated region
        $region37: #{tpu_custom_call.1} parent=35 // pred_check
          %p261 = pneg %p260
        $region38: #{tpu_custom_call.1} parent=35 // pred_check_branch
          %263 = sbr.rel (%p261) target = $region40
        $region39: #{tpu_custom_call.1} parent=35 // pred_region
          %264 = vst [vmem:[#allocation2] sm:$0x1] 0.0
          %265 = vst [vmem:[#allocation3] sm:$0x1] 0.0
        $region40: #{tpu_custom_call.1} parent=35 // pred_fallthru
          _
        %v266 = vld [vmem:[%s258] sm:$0xff]
        %v267 = vld [vmem:[%s258 + $0x8] sm:$0xff]
        %v268 = vld [vmem:[%s258 + $0x10] sm:$0xff]
        %v269 = vld [vmem:[%s258 + $0x18] sm:$0xff]
        %v270 = vld [vmem:[%s258 + $0x20] sm:$0xff]
        %v271 = vld [vmem:[%s258 + $0x28] sm:$0xff]
        %v272 = vld [vmem:[%s258 + $0x30] sm:$0xff]
        %v273 = vld [vmem:[%s258 + $0x38] sm:$0xff]
        %v274 = vld [vmem:[#allocation2] sm:$0x1]
        %v275 = vadd.f32 %v266, %v267
        %v276 = vadd.f32 %v275, %v268
        %v277 = vadd.f32 %v276, %v269
        %v278 = vadd.f32 %v277, %v270
        %v279 = vadd.f32 %v278, %v271
        %v280 = vadd.f32 %v279, %v272
        %v281 = vadd.f32 %v280, %v273
        %v282 = vrot.slane %v281, 4
        %v283 = vadd.f32 %v281, %v282
        %v284 = vrot.slane %v283, 2
        %v285 = vadd.f32 %v283, %v284
        %v286 = vrot.slane %v285, 1
        %v287 = vadd.f32 %v285, %v286
        %v288 = vadd.f32 %v274, %v287
        %289 = vst [vmem:[#allocation2] sm:$0x1] %v288
        %v290 = vld [vmem:[#allocation3] sm:$0x1]
        %v291 = vmul.f32 %v266, %v266
        %v292 = vmul.f32 %v267, %v267
        %v293 = vmul.f32 %v268, %v268
        %v294 = vmul.f32 %v269, %v269
        %v295 = vmul.f32 %v270, %v270
        %v296 = vmul.f32 %v271, %v271
        %v297 = vmul.f32 %v272, %v272
        %v298 = vmul.f32 %v273, %v273
        %v299 = vadd.f32 %v291, %v292
        %v300 = vadd.f32 %v299, %v293
        %v301 = vadd.f32 %v300, %v294
        %v302 = vadd.f32 %v301, %v295
        %v303 = vadd.f32 %v302, %v296
        %v304 = vadd.f32 %v303, %v297
        %v305 = vadd.f32 %v304, %v298
        %v306 = vrot.slane %v305, 4
        %v307 = vadd.f32 %v305, %v306
        %v308 = vrot.slane %v307, 2
        %v309 = vadd.f32 %v307, %v308
        %v310 = vrot.slane %v309, 1
        %v311 = vadd.f32 %v309, %v310
        %v312 = vadd.f32 %v290, %v311
        %313 = vst [vmem:[#allocation3] sm:$0x1] %v312
        // Predicated region
        $region41: #{tpu_custom_call.1} parent=35 // pred_check
          %p314 = pneg %p260
        $region42: #{tpu_custom_call.1} parent=35 // pred_check_branch
          %316 = sbr.rel (%p314) target = $region44
        $region43: #{tpu_custom_call.1} parent=35 // pred_region
          %v317 = vld [vmem:[%s1] sm:$0xff]
          %v318 = vld [vmem:[%s1 + $0x8] sm:$0xff]
          %v319 = vld [vmem:[%s1 + $0x10] sm:$0xff]
          %v320 = vld [vmem:[%s1 + $0x18] sm:$0xff]
          %v321 = vld [vmem:[%s1 + $0x20] sm:$0xff]
          %v322 = vld [vmem:[%s1 + $0x28] sm:$0xff]
          %v323 = vld [vmem:[%s1 + $0x30] sm:$0xff]
          %v324 = vld [vmem:[%s1 + $0x38] sm:$0xff]
          %v325 = vld [vmem:[%s1 + $0x40] sm:$0xff]
          %v326 = vld [vmem:[%s1 + $0x48] sm:$0xff]
          %v327 = vld [vmem:[%s1 + $0x50] sm:$0xff]
          %v328 = vld [vmem:[%s1 + $0x58] sm:$0xff]
          %v329 = vld [vmem:[%s1 + $0x60] sm:$0xff]
          %v330 = vld [vmem:[%s1 + $0x68] sm:$0xff]
          %v331 = vld [vmem:[%s1 + $0x70] sm:$0xff]
          %v332 = vld [vmem:[%s1 + $0x78] sm:$0xff]
          %v333 = vld [vmem:[#allocation2] sm:$0x1]
          %334 = vmatprep.subr.mxu0 0.0
          %335 = vmatpush1.msra.mxu0 %v317
          %336 = vmatprep.subr.mxu0 0.0
          %337 = vmatpush1.msra.mxu0 %v318
          %338 = vmatprep.subr.mxu0 0.0
          %339 = vmatpush1.msra.mxu0 %v319
          %340 = vmatprep.subr.mxu0 0.0
          %341 = vmatpush1.msra.mxu0 %v320
          %342 = vmatprep.subr.mxu0 0.0
          %343 = vmatpush1.msra.mxu0 %v321
          %344 = vmatprep.subr.mxu0 0.0
          %345 = vmatpush1.msra.mxu0 %v322
          %346 = vmatprep.subr.mxu0 0.0
          %347 = vmatpush1.msra.mxu0 %v323
          %348 = vmatprep.subr.mxu0 0.0
          %349 = vmatpush1.msra.mxu0 %v324
          %350 = vmatprep.subr.mxu0 0.0
          %351 = vmatpush1.msra.mxu0 %v325
          %352 = vmatprep.subr.mxu0 0.0
          %353 = vmatpush1.msra.mxu0 %v326
          %354 = vmatprep.subr.mxu0 0.0
          %355 = vmatpush1.msra.mxu0 %v327
          %356 = vmatprep.subr.mxu0 0.0
          %357 = vmatpush1.msra.mxu0 %v328
          %358 = vmatprep.subr.mxu0 0.0
          %359 = vmatpush1.msra.mxu0 %v329
          %360 = vmatprep.subr.mxu0 0.0
          %361 = vmatpush1.msra.mxu0 %v330
          %362 = vmatprep.subr.mxu0 0.0
          %363 = vmatpush1.msra.mxu0 %v331
          %364 = vmatprep.subr.mxu0 0.0
          %365 = vmatpush1.msra.mxu0 %v332
          %366 = vmatprep.subr.mxu0 0.0
          %367 = vmatpush1.msra.mxu0 0.0
          %368 = vmatprep.subr.mxu0 0.0
          %369 = vmatpush1.msra.mxu0 0.0
          %370 = vmatprep.subr.mxu0 0.0
          %371 = vmatpush1.msra.mxu0 0.0
          %372 = vmatprep.subr.mxu0 0.0
          %373 = vmatpush1.msra.mxu0 0.0
          %374 = vmatprep.subr.mxu0 0.0
          %375 = vmatpush1.msra.mxu0 0.0
          %376 = vmatprep.subr.mxu0 0.0
          %377 = vmatpush1.msra.mxu0 0.0
          %378 = vmatprep.subr.mxu0 0.0
          %379 = vmatpush1.msra.mxu0 0.0
          %380 = vmatprep.subr.mxu0 0.0
          %381 = vmatpush1.msra.mxu0 0.0
          %382 = vmatprep.subr.mxu0 0.0
          %383 = vmatpush1.msra.mxu0 0.0
          %384 = vmatprep.subr.mxu0 0.0
          %385 = vmatpush1.msra.mxu0 0.0
          %386 = vmatprep.subr.mxu0 0.0
          %387 = vmatpush1.msra.mxu0 0.0
          %388 = vmatprep.subr.mxu0 0.0
          %389 = vmatpush1.msra.mxu0 0.0
          %390 = vmatprep.subr.mxu0 0.0
          %391 = vmatpush1.msra.mxu0 0.0
          %392 = vmatprep.subr.mxu0 0.0
          %393 = vmatpush1.msra.mxu0 0.0
          %394 = vmatprep.subr.mxu0 0.0
          %395 = vmatpush1.msra.mxu0 0.0
          %396 = vmatprep.subr.mxu0 0.0
          %397 = vmatpush1.msra.mxu0 0.0
          %398 = vmatprep.mubr.f32.mxu0 0.0
          %399 = vmatmul.mubr.f32.gmra.mrb[0].mxu0 %v333
          %v400 = vpop.f32.mrb[0].mxu0
          %v401 = vadd.f32 0.0, %v400
          %v402 = vpop.f32.mrb[0].mxu0
          %403 = vdwg.mxu0
          %v404 = vmul.f32 %v401, 0.015625
          %v405 = vld [vmem:[#allocation3] sm:$0x1]
          %406 = vmatprep.subr.mxu0 0.0
          %407 = vmatpush1.msra.mxu0 %v317
          %408 = vmatprep.subr.mxu0 0.0
          %409 = vmatpush1.msra.mxu0 %v318
          %410 = vmatprep.subr.mxu0 0.0
          %411 = vmatpush1.msra.mxu0 %v319
          %412 = vmatprep.subr.mxu0 0.0
          %413 = vmatpush1.msra.mxu0 %v320
          %414 = vmatprep.subr.mxu0 0.0
          %415 = vmatpush1.msra.mxu0 %v321
          %416 = vmatprep.subr.mxu0 0.0
          %417 = vmatpush1.msra.mxu0 %v322
          %418 = vmatprep.subr.mxu0 0.0
          %419 = vmatpush1.msra.mxu0 %v323
          %420 = vmatprep.subr.mxu0 0.0
          %421 = vmatpush1.msra.mxu0 %v324
          %422 = vmatprep.subr.mxu0 0.0
          %423 = vmatpush1.msra.mxu0 %v325
          %424 = vmatprep.subr.mxu0 0.0
          %425 = vmatpush1.msra.mxu0 %v326
          %426 = vmatprep.subr.mxu0 0.0
          %427 = vmatpush1.msra.mxu0 %v327
          %428 = vmatprep.subr.mxu0 0.0
          %429 = vmatpush1.msra.mxu0 %v328
          %430 = vmatprep.subr.mxu0 0.0
          %431 = vmatpush1.msra.mxu0 %v329
          %432 = vmatprep.subr.mxu0 0.0
          %433 = vmatpush1.msra.mxu0 %v330
          %434 = vmatprep.subr.mxu0 0.0
          %435 = vmatpush1.msra.mxu0 %v331
          %436 = vmatprep.subr.mxu0 0.0
          %437 = vmatpush1.msra.mxu0 %v332
          %438 = vmatprep.subr.mxu0 0.0
          %439 = vmatpush1.msra.mxu0 0.0
          %440 = vmatprep.subr.mxu0 0.0
          %441 = vmatpush1.msra.mxu0 0.0
          %442 = vmatprep.subr.mxu0 0.0
          %443 = vmatpush1.msra.mxu0 0.0
          %444 = vmatprep.subr.mxu0 0.0
          %445 = vmatpush1.msra.mxu0 0.0
          %446 = vmatprep.subr.mxu0 0.0
          %447 = vmatpush1.msra.mxu0 0.0
          %448 = vmatprep.subr.mxu0 0.0
          %449 = vmatpush1.msra.mxu0 0.0
          %450 = vmatprep.subr.mxu0 0.0
          %451 = vmatpush1.msra.mxu0 0.0
          %452 = vmatprep.subr.mxu0 0.0
          %453 = vmatpush1.msra.mxu0 0.0
          %454 = vmatprep.subr.mxu0 0.0
          %455 = vmatpush1.msra.mxu0 0.0
          %456 = vmatprep.subr.mxu0 0.0
          %457 = vmatpush1.msra.mxu0 0.0
          %458 = vmatprep.subr.mxu0 0.0
          %459 = vmatpush1.msra.mxu0 0.0
          %460 = vmatprep.subr.mxu0 0.0
          %461 = vmatpush1.msra.mxu0 0.0
          %462 = vmatprep.subr.mxu0 0.0
          %463 = vmatpush1.msra.mxu0 0.0
          %464 = vmatprep.subr.mxu0 0.0
          %465 = vmatpush1.msra.mxu0 0.0
          %466 = vmatprep.subr.mxu0 0.0
          %467 = vmatpush1.msra.mxu0 0.0
          %468 = vmatprep.subr.mxu0 0.0
          %469 = vmatpush1.msra.mxu0 0.0
          %470 = vmatprep.mubr.f32.mxu0 0.0
          %471 = vmatmul.mubr.f32.gmra.mrb[0].mxu0 %v405
          %v472 = vpop.f32.mrb[0].mxu0
          %v473 = vadd.f32 0.0, %v472
          %v474 = vpop.f32.mrb[0].mxu0
          %475 = vdwg.mxu0
          %v476 = vmul.f32 %v473, 0.015625
          %v477 = vmul.f32 %v404, %v404
          %v478 = vsub.f32 %v476, %v477
          %v479 = vmax.f32 %v478, 0.0
          %vm480 = vcmask 261120
          %v482 = vsel %vm480, %v404, 0
          %v485 = vsel %vm480, %v317, 0
          %v488 = vsel %vm480, %v318, 0
          %v491 = vsel %vm480, %v319, 0
          %v494 = vsel %vm480, %v320, 0
          %v497 = vsel %vm480, %v321, 0
          %v500 = vsel %vm480, %v322, 0
          %v503 = vsel %vm480, %v323, 0
          %v506 = vsel %vm480, %v324, 0
          %v509 = vsel %vm480, %v325, 0
          %v512 = vsel %vm480, %v326, 0
          %v515 = vsel %vm480, %v327, 0
          %v518 = vsel %vm480, %v328, 0
          %v521 = vsel %vm480, %v329, 0
          %v524 = vsel %vm480, %v330, 0
          %v527 = vsel %vm480, %v331, 0
          %v530 = vsel %vm480, %v332, 0
          %532 = vmatprep.subr.mxu0 0.0
          %533 = vmatpush1.xpose.msra.mxu0 %v485
          %534 = vmatprep.subr.mxu0 0.0
          %535 = vmatpush1.xpose.msra.mxu0 %v488
          %536 = vmatprep.subr.mxu0 0.0
          %537 = vmatpush1.xpose.msra.mxu0 %v491
          %538 = vmatprep.subr.mxu0 0.0
          %539 = vmatpush1.xpose.msra.mxu0 %v494
          %540 = vmatprep.subr.mxu0 0.0
          %541 = vmatpush1.xpose.msra.mxu0 %v497
          %542 = vmatprep.subr.mxu0 0.0
          %543 = vmatpush1.xpose.msra.mxu0 %v500
          %544 = vmatprep.subr.mxu0 0.0
          %545 = vmatpush1.xpose.msra.mxu0 %v503
          %546 = vmatprep.subr.mxu0 0.0
          %547 = vmatpush1.xpose.msra.mxu0 %v506
          %548 = vmatprep.subr.mxu0 0.0
          %549 = vmatpush1.xpose.msra.mxu0 %v509
          %550 = vmatprep.subr.mxu0 0.0
          %551 = vmatpush1.xpose.msra.mxu0 %v512
          %552 = vmatprep.subr.mxu0 0.0
          %553 = vmatpush1.xpose.msra.mxu0 %v515
          %554 = vmatprep.subr.mxu0 0.0
          %555 = vmatpush1.xpose.msra.mxu0 %v518
          %556 = vmatprep.subr.mxu0 0.0
          %557 = vmatpush1.xpose.msra.mxu0 %v521
          %558 = vmatprep.subr.mxu0 0.0
          %559 = vmatpush1.xpose.msra.mxu0 %v524
          %560 = vmatprep.subr.mxu0 0.0
          %561 = vmatpush1.xpose.msra.mxu0 %v527
          %562 = vmatprep.subr.mxu0 0.0
          %563 = vmatpush1.xpose.msra.mxu0 %v530
          %564 = vmatprep.subr.mxu0 0.0
          %565 = vmatpush1.xpose.msra.mxu0 0.0
          %566 = vmatprep.subr.mxu0 0.0
          %567 = vmatpush1.xpose.msra.mxu0 0.0
          %568 = vmatprep.subr.mxu0 0.0
          %569 = vmatpush1.xpose.msra.mxu0 0.0
          %570 = vmatprep.subr.mxu0 0.0
          %571 = vmatpush1.xpose.msra.mxu0 0.0
          %572 = vmatprep.subr.mxu0 0.0
          %573 = vmatpush1.xpose.msra.mxu0 0.0
          %574 = vmatprep.subr.mxu0 0.0
          %575 = vmatpush1.xpose.msra.mxu0 0.0
          %576 = vmatprep.subr.mxu0 0.0
          %577 = vmatpush1.xpose.msra.mxu0 0.0
          %578 = vmatprep.subr.mxu0 0.0
          %579 = vmatpush1.xpose.msra.mxu0 0.0
          %580 = vmatprep.subr.mxu0 0.0
          %581 = vmatpush1.xpose.msra.mxu0 0.0
          %582 = vmatprep.subr.mxu0 0.0
          %583 = vmatpush1.xpose.msra.mxu0 0.0
          %584 = vmatprep.subr.mxu0 0.0
          %585 = vmatpush1.xpose.msra.mxu0 0.0
          %586 = vmatprep.subr.mxu0 0.0
          %587 = vmatpush1.xpose.msra.mxu0 0.0
          %588 = vmatprep.subr.mxu0 0.0
          %589 = vmatpush1.xpose.msra.mxu0 0.0
          %590 = vmatprep.subr.mxu0 0.0
          %591 = vmatpush1.xpose.msra.mxu0 0.0
          %592 = vmatprep.subr.mxu0 0.0
          %593 = vmatpush1.xpose.msra.mxu0 0.0
          %594 = vmatprep.subr.mxu0 0.0
          %595 = vmatpush1.xpose.msra.mxu0 0.0
          %596 = vmatprep.mubr.f32.mxu0 0.0
          %597 = vmatmul.mubr.f32.gmra.mrb[0].mxu0 %v482
          %v598 = vpop.f32.mrb[0].mxu0
          %v599 = vadd.f32 0.0, %v598
          %v600 = vpop.f32.mrb[0].mxu0
          %601 = vdwg.mxu0
          %v603 = vsel %vm480, %v479, 0
          %605 = vmatprep.subr.mxu0 0.0
          %606 = vmatpush1.xpose.msra.mxu0 %v485
          %607 = vmatprep.subr.mxu0 0.0
          %608 = vmatpush1.xpose.msra.mxu0 %v488
          %609 = vmatprep.subr.mxu0 0.0
          %610 = vmatpush1.xpose.msra.mxu0 %v491
          %611 = vmatprep.subr.mxu0 0.0
          %612 = vmatpush1.xpose.msra.mxu0 %v494
          %613 = vmatprep.subr.mxu0 0.0
          %614 = vmatpush1.xpose.msra.mxu0 %v497
          %615 = vmatprep.subr.mxu0 0.0
          %616 = vmatpush1.xpose.msra.mxu0 %v500
          %617 = vmatprep.subr.mxu0 0.0
          %618 = vmatpush1.xpose.msra.mxu0 %v503
          %619 = vmatprep.subr.mxu0 0.0
          %620 = vmatpush1.xpose.msra.mxu0 %v506
          %621 = vmatprep.subr.mxu0 0.0
          %622 = vmatpush1.xpose.msra.mxu0 %v509
          %623 = vmatprep.subr.mxu0 0.0
          %624 = vmatpush1.xpose.msra.mxu0 %v512
          %625 = vmatprep.subr.mxu0 0.0
          %626 = vmatpush1.xpose.msra.mxu0 %v515
          %627 = vmatprep.subr.mxu0 0.0
          %628 = vmatpush1.xpose.msra.mxu0 %v518
          %629 = vmatprep.subr.mxu0 0.0
          %630 = vmatpush1.xpose.msra.mxu0 %v521
          %631 = vmatprep.subr.mxu0 0.0
          %632 = vmatpush1.xpose.msra.mxu0 %v524
          %633 = vmatprep.subr.mxu0 0.0
          %634 = vmatpush1.xpose.msra.mxu0 %v527
          %635 = vmatprep.subr.mxu0 0.0
          %636 = vmatpush1.xpose.msra.mxu0 %v530
          %637 = vmatprep.subr.mxu0 0.0
          %638 = vmatpush1.xpose.msra.mxu0 0.0
          %639 = vmatprep.subr.mxu0 0.0
          %640 = vmatpush1.xpose.msra.mxu0 0.0
          %641 = vmatprep.subr.mxu0 0.0
          %642 = vmatpush1.xpose.msra.mxu0 0.0
          %643 = vmatprep.subr.mxu0 0.0
          %644 = vmatpush1.xpose.msra.mxu0 0.0
          %645 = vmatprep.subr.mxu0 0.0
          %646 = vmatpush1.xpose.msra.mxu0 0.0
          %647 = vmatprep.subr.mxu0 0.0
          %648 = vmatpush1.xpose.msra.mxu0 0.0
          %649 = vmatprep.subr.mxu0 0.0
          %650 = vmatpush1.xpose.msra.mxu0 0.0
          %651 = vmatprep.subr.mxu0 0.0
          %652 = vmatpush1.xpose.msra.mxu0 0.0
          %653 = vmatprep.subr.mxu0 0.0
          %654 = vmatpush1.xpose.msra.mxu0 0.0
          %655 = vmatprep.subr.mxu0 0.0
          %656 = vmatpush1.xpose.msra.mxu0 0.0
          %657 = vmatprep.subr.mxu0 0.0
          %658 = vmatpush1.xpose.msra.mxu0 0.0
          %659 = vmatprep.subr.mxu0 0.0
          %660 = vmatpush1.xpose.msra.mxu0 0.0
          %661 = vmatprep.subr.mxu0 0.0
          %662 = vmatpush1.xpose.msra.mxu0 0.0
          %663 = vmatprep.subr.mxu0 0.0
          %664 = vmatpush1.xpose.msra.mxu0 0.0
          %665 = vmatprep.subr.mxu0 0.0
          %666 = vmatpush1.xpose.msra.mxu0 0.0
          %667 = vmatprep.subr.mxu0 0.0
          %668 = vmatpush1.xpose.msra.mxu0 0.0
          %669 = vmatprep.mubr.f32.mxu0 0.0
          %670 = vmatmul.mubr.f32.gmra.mrb[0].mxu0 %v603
          %v671 = vpop.f32.mrb[0].mxu0
          %v672 = vadd.f32 1e-06, %v671
          %v673 = vpop.f32.mrb[0].mxu0
          %674 = vdwg.mxu0
          %v675 = vrsqrt.pop %v672
          %v676 = vld [vmem:[%s2] sm:$0x1]
          %v677 = vmul.f32 %v676, %v675
          %678 = vst [vmem:[%s243] sm:$0x1] %v677
          %v679 = vld [vmem:[%s3] sm:$0x1]
          %v680 = vmul.f32 %v599, %v677
          %v681 = vsub.f32 %v679, %v680
          %682 = vst [vmem:[%s249] sm:$0x1] %v681
        $region44: #{tpu_custom_call.1} parent=35 // pred_fallthru
          _
        %s683 = sand.u32 %s134, 1
        %s684 = scalar_lea.sflag [#allocation5], %s683
        %s685 = sand.u32 %s134, 1
        %s686 = scalar_lea.vmem [#allocation4], %s685
        %s687 = sand.u32 %s160, 1
        %s688 = scalar_lea.sflag [#allocation7], %s687
        %s689 = sand.u32 %s160, 1
        %s690 = scalar_lea.vmem [#allocation6], %s689
        // Predicated region
        $region45: #{tpu_custom_call.1} parent=35 // pred_check
          %p691 = pneg %p144
        $region46: #{tpu_custom_call.1} parent=35 // pred_check_branch
          %693 = sbr.rel (%p691) target = $region48
        $region47: #{tpu_custom_call.1} parent=35 // pred_region
          %s695 = ssub.s32 16, 16
          %696 = vsyncadd %s684, %s695
          %s697 = smul.addr %s27, 16
          %s698 = scalar_lea.hbm %s4, %s697
          %s700 = sshll.u32 %s686, 4
          %s701 = int_to_ptr.vmem [resolvable:$true] %s700
          %703 = dma.vmem_to_hbm [thread:$0]  %s701, 16, %s698, %s684
        $region48: #{tpu_custom_call.1} parent=35 // pred_fallthru
          _
        // Predicated region
        $region49: #{tpu_custom_call.1} parent=35 // pred_check
          %p704 = pneg %p170
        $region50: #{tpu_custom_call.1} parent=35 // pred_check_branch
          %706 = sbr.rel (%p704) target = $region52
        $region51: #{tpu_custom_call.1} parent=35 // pred_region
          %s708 = ssub.s32 16, 16
          %709 = vsyncadd %s688, %s708
          %s710 = smul.addr %s27, 16
          %s711 = scalar_lea.hbm %s5, %s710
          %s713 = sshll.u32 %s690, 4
          %s714 = int_to_ptr.vmem [resolvable:$true] %s713
          %716 = dma.vmem_to_hbm [thread:$0]  %s714, 16, %s711, %s688
        $region52: #{tpu_custom_call.1} parent=35 // pred_fallthru
          _
      $region36: #{tpu_custom_call.1} parent=5 // pred_fallthru
        _
      %p717 = scmp.le.s32.totalorder 2, %s18
      // Predicated region
      $region53: #{tpu_custom_call.1} parent=5 // pred_check
        %p718 = pneg %p717
      $region54: #{tpu_custom_call.1} parent=5 // pred_check_branch
        %720 = sbr.rel (%p718) target = $region56
      $region55: #{tpu_custom_call.1} parent=5 // pred_region
        %s721 = ssub.s32 %s18, 2
        // Predicated region
        $region57: #{tpu_custom_call.1} parent=55 // pred_check
          %p722 = pneg %p150
        $region58: #{tpu_custom_call.1} parent=55 // pred_check_branch
          %724 = sbr.rel (%p722) target = $region60
        $region59: #{tpu_custom_call.1} parent=55 // pred_region
          %s725 = sand.u32 %s135, 1
          %s726 = scalar_lea.sflag [#allocation5], %s725
          %s727 = sand.u32 %s135, 1
          %s728 = scalar_lea.vmem [#allocation4], %s727
          %729 = dma.done %s726, 16
        $region60: #{tpu_custom_call.1} parent=55 // pred_fallthru
          _
        // Predicated region
        $region61: #{tpu_custom_call.1} parent=55 // pred_check
          %p730 = pneg %p176
        $region62: #{tpu_custom_call.1} parent=55 // pred_check_branch
          %732 = sbr.rel (%p730) target = $region64
        $region63: #{tpu_custom_call.1} parent=55 // pred_region
          %s733 = sand.u32 %s161, 1
          %s734 = scalar_lea.sflag [#allocation7], %s733
          %s735 = sand.u32 %s161, 1
          %s736 = scalar_lea.vmem [#allocation6], %s735
          %737 = dma.done %s734, 16
        $region64: #{tpu_custom_call.1} parent=55 // pred_fallthru
          _
      $region56: #{tpu_custom_call.1} parent=5 // pred_fallthru
        _
    $region6: #{tpu_custom_call.1} parent=1 // loop_footer
      %s22 = sadd.s32 1, %s18
    $region7: #{tpu_custom_call.1} parent=1 // loop_footer_branch
      %17 = sbr.rel target = $region3
    $region8: #{tpu_custom_call.1} parent=1 // loop_exit
      _
    %738 = vsyncpa [#allocation5], 1
    %s739 = scalar_lea.sflag [#allocation5], 1
    %740 = vsyncpa %s739, 1
    %741 = vsyncpa [#allocation7], 1
    %s742 = scalar_lea.sflag [#allocation7], 1
    %743 = vsyncpa %s742, 1

</llo_original>
